<compile_context>
chip_gen: v7x
topology: tpu7x:2x2x1
jax: 0.10.0
libtpu: 0.0.40
codegen_flags: <defaults>
</compile_context>

<pallas_src>
import functools

import jax
import jax.numpy as jnp
from jax.experimental import pallas as pl
from jax.experimental.pallas import tpu as pltpu


def _round_up(x, m):
    return ((x + m - 1) // m) * m


# ---------------------------------------------------------------------------
# Fused Block_dual kernel (one batch element per grid step).
# ---------------------------------------------------------------------------
def _block_dual_kernel(x_ref, m_ref, dw1_ref, w1_ref, b1_ref,
                       dw2_ref, w2_ref, b2_ref, o_ref,
                       *, P, Wp2, Lout, use_mxu):
    """x_ref  : (1, C, Le)    spatially padded, flattened, lane-embedded input
       m_ref  : (1, Lout)     interior mask (1.0 inside the original HxW image)
       dw*_ref: (C, 9)        depthwise 3x3 taps, tap index k = 3*dy + dx on lanes
       w*_ref : (Cout, Cin)   pointwise 1x1 weights with the BN scale folded in
       b*_ref : (Cout, 1)     folded BN bias (f32)
       o_ref  : (1, Cout, Lout)
    """

    def depthwise(tap_of, taps_ref):
        # 9-tap stencil in the flattened padded coordinate space; f32 accumulate,
        # initialized with the first tap product (no zero-fill).
        acc = None
        for k in range(9):
            dy, dx = divmod(k, 3)
            off = (dy - 1) * Wp2 + (dx - 1)
            t = tap_of(off) * taps_ref[:, k:k + 1].astype(jnp.float32)
            acc = t if acc is None else acc + t
        return acc                                            # (Cin, Lout) f32

    def pointwise(d, w_ref, b_ref):
        # 1x1 conv over channels (+ folded BN).  HW stays on lanes.
        if use_mxu:
            y = jnp.dot(w_ref[...], d.astype(w_ref.dtype),
                        preferred_element_type=jnp.float32)
        else:
            # Tiny channel counts: a mostly-idle MXU pass costs more than a few
            # lane-dense VPU outer-product MACs.
            y = None
            for c in range(w_ref.shape[1]):
                t = w_ref[:, c:c + 1].astype(jnp.float32) * d[c:c + 1, :]
                y = t if y is None else y + t
        return y + b_ref[...]                                 # (Cout, Lout) f32

    mask = m_ref[...]                                         # (1, Lout) f32

    # ---- stage 1: depthwise 3x3 -> pointwise 1x1 (+ BN1 folded) ----
    d1 = depthwise(
        lambda off: x_ref[0, :, P + off:P + off + Lout].astype(jnp.float32),
        dw1_ref)
    y1 = pointwise(d1, w1_ref, b1_ref)
    # conv2 sees y1 zero-padded by 1: zero the halo ring (and the lane-pad tail).
    y1 = y1 * mask

    # ---- stage 2: depthwise 3x3 -> pointwise 1x1 (+ BN2 folded) ----
    cout = y1.shape[0]
    zpad = jnp.zeros((cout, P), jnp.float32)
    y1e = jnp.concatenate([zpad, y1, zpad], axis=1)           # lane-aligned concat
    d2 = depthwise(lambda off: y1e[:, P + off:P + off + Lout], dw2_ref)
    y2 = pointwise(d2, w2_ref, b2_ref)

    # ---- residual add + ReLU in f32; cast down only on the final store ----
    identity = x_ref[0, :, P:P + Lout].astype(jnp.float32)
    o_ref[0] = jnp.maximum(y2 + identity, 0.0).astype(o_ref.dtype)


# ---------------------------------------------------------------------------
# Wrapper: layout plumbing + BN folding, one pallas_call.
# ---------------------------------------------------------------------------
def _fold_bn(gamma, beta, mean, var, eps=1e-5):
    s = gamma / jnp.sqrt(var + eps)
    return s, beta - mean * s


def block_dual_forward(x, params, eps=1e-5):
    """Block_dual forward (inference-mode BatchNorm, stride=1, no i_downsample)."""
    B, C, H, W = x.shape
    Cout = params["pw1"].shape[0]
    if Cout != C:
        raise ValueError("Block_dual residual add requires in_channels == "
                         "out_channels when i_downsample is None.")
    # TODO(synk): training-mode BatchNorm (batch statistics) is not implemented;
    #             running stats are folded into scale/bias (inference semantics).
    # TODO(synk): stride > 1 and a user-supplied i_downsample branch are not implemented.
    # TODO(synk): very large H*W is processed whole per grid step; add spatial halo
    #             tiling if the per-step VMEM footprint grows too large.

    dtype = x.dtype
    Wp2 = W + 2
    Lp = (H + 2) * (W + 2)            # flattened, spatially padded plane length
    P = _round_up(W + 3, 128)         # lane-aligned halo so every tap slice is in bounds
    Lout = _round_up(Lp, 128)         # lane-dense output length
    Le = P + Lout + P

    # Fold BN (inference) into the pointwise weights / a bias, wrapper-side.
    s1, b1 = _fold_bn(params["bn1_gamma"], params["bn1_beta"],
                      params["bn1_mean"], params["bn1_var"], eps)
    s2, b2 = _fold_bn(params["bn2_gamma"], params["bn2_beta"],
                      params["bn2_mean"], params["bn2_var"], eps)
    w1 = (s1[:, None] * params["pw1"]).astype(dtype)          # (Cout, C)
    w2 = (s2[:, None] * params["pw2"]).astype(dtype)          # (Cout, Cout)
    b1c = b1.reshape(Cout, 1).astype(jnp.float32)
    b2c = b2.reshape(Cout, 1).astype(jnp.float32)
    dw1 = params["dw1"].reshape(C, 9).astype(jnp.float32)     # tiny (C,9) tap block
    dw2 = params["dw2"].reshape(Cout, 9).astype(jnp.float32)

    # Zero-pad spatially by 1 (conv padding), flatten HW onto lanes, and embed at
    # lane-aligned offset P inside a lane-dense buffer of length Le.
    xp = jnp.pad(x, ((0, 0), (0, 0), (1, 1), (1, 1))).reshape(B, C, Lp)
    xe = jnp.pad(xp, ((0, 0), (0, 0), (P, Le - P - Lp)))      # (B, C, Le)

    # Interior mask over the padded coordinate space (1.0 inside the HxW image).
    q = jnp.arange(Lout, dtype=jnp.int32)
    row, col = q // Wp2, q % Wp2
    mask = (((row >= 1) & (row <= H) & (col >= 1) & (col <= W) & (q < Lp))
            .astype(jnp.float32).reshape(1, Lout))

    use_mxu = C > 16                  # MXU only when the contraction is big enough

    kernel = functools.partial(_block_dual_kernel, P=P, Wp2=Wp2, Lout=Lout,
                               use_mxu=use_mxu)

    out = pl.pallas_call(
        kernel,
        out_shape=jax.ShapeDtypeStruct((B, Cout, Lout), dtype),
        grid_spec=pltpu.PrefetchScalarGridSpec(
            num_scalar_prefetch=0,
            grid=(B,),
            in_specs=[
                pl.BlockSpec((1, C, Le), lambda b: (b, 0, 0)),
                pl.BlockSpec((1, Lout), lambda b: (0, 0)),
                pl.BlockSpec((C, 9), lambda b: (0, 0)),
                pl.BlockSpec((Cout, C), lambda b: (0, 0)),
                pl.BlockSpec((Cout, 1), lambda b: (0, 0)),
                pl.BlockSpec((Cout, 9), lambda b: (0, 0)),
                pl.BlockSpec((Cout, Cout), lambda b: (0, 0)),
                pl.BlockSpec((Cout, 1), lambda b: (0, 0)),
            ],
            out_specs=pl.BlockSpec((1, Cout, Lout), lambda b: (b, 0, 0)),
        ),
        compiler_params=pltpu.CompilerParams(
            dimension_semantics=("parallel",),     # megacore / v7x: batch split across TCs
            vmem_limit_bytes=48 * 1024 * 1024,     # > v5e 16 MiB scoped default, < v7x 64 MiB physical
        ),
    )(xe, mask, dw1, w1, b1c, dw2, w2, b2c)

    # Drop the lane padding and the halo ring; back to NCHW.
    return out[:, :, :Lp].reshape(B, Cout, H + 2, W + 2)[:, :, 1:H + 1, 1:W + 1]


# ---------------------------------------------------------------------------
# Pure-JAX reference (same inference-mode BN semantics).
# ---------------------------------------------------------------------------
def _reference_forward(x, params, eps=1e-5):
    def dual_conv(inp, dw, pw):
        _, _, Hc, Wc = inp.shape
        xp = jnp.pad(inp, ((0, 0), (0, 0), (1, 1), (1, 1)))
        d = jnp.zeros_like(inp)
        for dy in range(3):
            for dx in range(3):
                d = d + xp[:, :, dy:dy + Hc, dx:dx + Wc] * dw[None, :, dy, dx, None, None]
        return jnp.einsum("oc,bchw->bohw", pw, d,
                          precision=jax.lax.Precision.HIGHEST)

    def bn(inp, g, bta, m, v):
        s = g / jnp.sqrt(v + eps)
        return inp * s[None, :, None, None] + (bta - m * s)[None, :, None, None]

    y = dual_conv(x, params["dw1"], params["pw1"])
    y = bn(y, params["bn1_gamma"], params["bn1_beta"],
           params["bn1_mean"], params["bn1_var"])
    y = dual_conv(y, params["dw2"], params["pw2"])
    y = bn(y, params["bn2_gamma"], params["bn2_beta"],
           params["bn2_mean"], params["bn2_var"])
    return jnp.maximum(y + x, 0.0)


if __name__ == "__main__":
    # in_channels == out_channels, stride = 1, i_downsample = None (default Block_dual).
    B, C, H, W = 2, 4, 16, 16
    Cout = C
    key = jax.random.PRNGKey(0)
    keys = jax.random.split(key, 12)

    def uniform(k, shape, bound):
        return jax.random.uniform(k, shape, jnp.float32, -bound, bound)

    x = jax.random.normal(keys[0], (B, C, H, W), dtype=jnp.float32)
    params = {
        "dw1": uniform(keys[1], (C, 3, 3), 1.0 / 3.0),
        "pw1": uniform(keys[2], (Cout, C), C ** -0.5),
        "bn1_gamma": jax.random.uniform(keys[3], (Cout,), jnp.float32, 0.5, 1.5),
        "bn1_beta": 0.1 * jax.random.normal(keys[4], (Cout,), jnp.float32),
        "bn1_mean": 0.1 * jax.random.normal(keys[5], (Cout,), jnp.float32),
        "bn1_var": jax.random.uniform(keys[6], (Cout,), jnp.float32, 0.5, 1.5),
        "dw2": uniform(keys[7], (Cout, 3, 3), 1.0 / 3.0),
        "pw2": uniform(keys[8], (Cout, Cout), Cout ** -0.5),
        "bn2_gamma": jax.random.uniform(keys[9], (Cout,), jnp.float32, 0.5, 1.5),
        "bn2_beta": 0.1 * jax.random.normal(keys[10], (Cout,), jnp.float32),
        "bn2_mean": 0.1 * jax.random.normal(keys[11], (Cout,), jnp.float32),
        "bn2_var": jnp.full((Cout,), 0.8, jnp.float32),
    }

    out = jax.jit(block_dual_forward)(x, params)
    out = jax.block_until_ready(out)

    ref = _reference_forward(x, params)
    assert out.shape == (B, Cout, H, W)
    max_err = float(jnp.max(jnp.abs(out - ref)))
    assert jnp.allclose(out, ref, atol=1e-3, rtol=1e-3), max_err

    print("KERNEL_OK")
</pallas_src>

<mosaic_0001>
module attributes {stable_mosaic.version = 11 : i64} {
  func.func @_block_dual_kernel(%arg0: i32, %arg1: memref<1x4x640xf32, #tpu.memory_space<vmem>>, %arg2: memref<1x384xf32, #tpu.memory_space<vmem>>, %arg3: memref<4x9xf32, #tpu.memory_space<vmem>>, %arg4: memref<4x4xf32, #tpu.memory_space<vmem>>, %arg5: memref<4x1xf32, #tpu.memory_space<vmem>>, %arg6: memref<4x9xf32, #tpu.memory_space<vmem>>, %arg7: memref<4x4xf32, #tpu.memory_space<vmem>>, %arg8: memref<4x1xf32, #tpu.memory_space<vmem>>, %arg9: memref<1x4x384xf32, #tpu.memory_space<vmem>>) attributes {dimension_semantics = [#tpu.dimension_semantics<parallel>], iteration_bounds = array<i64: 2>, scalar_prefetch = 0 : i64, scratch_operands = 0 : i64, tpu.core_type = #tpu.core_type<tc>, window_params = [{transform_indices = @transform_0, window_bounds = array<i64: 1, 4, 640>}, {pipeline_mode = #tpu.pipeline_mode<synchronous>, transform_indices = @transform_1, window_bounds = array<i64: 1, 384>}, {pipeline_mode = #tpu.pipeline_mode<synchronous>, transform_indices = @transform_2, window_bounds = array<i64: 4, 9>}, {pipeline_mode = #tpu.pipeline_mode<synchronous>, transform_indices = @transform_3, window_bounds = array<i64: 4, 4>}, {pipeline_mode = #tpu.pipeline_mode<synchronous>, transform_indices = @transform_4, window_bounds = array<i64: 4, 1>}, {pipeline_mode = #tpu.pipeline_mode<synchronous>, transform_indices = @transform_5, window_bounds = array<i64: 4, 9>}, {pipeline_mode = #tpu.pipeline_mode<synchronous>, transform_indices = @transform_6, window_bounds = array<i64: 4, 4>}, {pipeline_mode = #tpu.pipeline_mode<synchronous>, transform_indices = @transform_7, window_bounds = array<i64: 4, 1>}, {transform_indices = @transform_8, window_bounds = array<i64: 1, 4, 384>}]} {
    %c0 = arith.constant 0 : index
    %c0_0 = arith.constant 0 : index
    %0 = vector.load %arg2[%c0, %c0_0] : memref<1x384xf32, #tpu.memory_space<vmem>>, vector<1x384xf32>
    %c0_1 = arith.constant 0 : index
    %c0_2 = arith.constant 0 : index
    %c109 = arith.constant 109 : index
    %1 = vector.load %arg1[%c0_1, %c0_2, %c109] : memref<1x4x640xf32, #tpu.memory_space<vmem>>, vector<1x4x384xf32>
    %2 = vector.shape_cast %1 : vector<1x4x384xf32> to vector<4x384xf32>
    %c0_3 = arith.constant 0 : index
    %c0_4 = arith.constant 0 : index
    %3 = vector.load %arg3[%c0_3, %c0_4] : memref<4x9xf32, #tpu.memory_space<vmem>>, vector<4x1xf32>
    %4 = vector.broadcast %3 : vector<4x1xf32> to vector<4x384xf32>
    %5 = arith.mulf %2, %4 : vector<4x384xf32>
    %c0_5 = arith.constant 0 : index
    %c0_6 = arith.constant 0 : index
    %c110 = arith.constant 110 : index
    %6 = vector.load %arg1[%c0_5, %c0_6, %c110] : memref<1x4x640xf32, #tpu.memory_space<vmem>>, vector<1x4x384xf32>
    %7 = vector.shape_cast %6 : vector<1x4x384xf32> to vector<4x384xf32>
    %c0_7 = arith.constant 0 : index
    %c1 = arith.constant 1 : index
    %8 = vector.load %arg3[%c0_7, %c1] : memref<4x9xf32, #tpu.memory_space<vmem>>, vector<4x1xf32>
    %9 = vector.broadcast %8 : vector<4x1xf32> to vector<4x384xf32>
    %10 = arith.mulf %7, %9 : vector<4x384xf32>
    %11 = arith.addf %5, %10 : vector<4x384xf32>
    %c0_8 = arith.constant 0 : index
    %c0_9 = arith.constant 0 : index
    %c111 = arith.constant 111 : index
    %12 = vector.load %arg1[%c0_8, %c0_9, %c111] : memref<1x4x640xf32, #tpu.memory_space<vmem>>, vector<1x4x384xf32>
    %13 = vector.shape_cast %12 : vector<1x4x384xf32> to vector<4x384xf32>
    %c0_10 = arith.constant 0 : index
    %c2 = arith.constant 2 : index
    %14 = vector.load %arg3[%c0_10, %c2] : memref<4x9xf32, #tpu.memory_space<vmem>>, vector<4x1xf32>
    %15 = vector.broadcast %14 : vector<4x1xf32> to vector<4x384xf32>
    %16 = arith.mulf %13, %15 : vector<4x384xf32>
    %17 = arith.addf %11, %16 : vector<4x384xf32>
    %c0_11 = arith.constant 0 : index
    %c0_12 = arith.constant 0 : index
    %c127 = arith.constant 127 : index
    %18 = vector.load %arg1[%c0_11, %c0_12, %c127] : memref<1x4x640xf32, #tpu.memory_space<vmem>>, vector<1x4x384xf32>
    %19 = vector.shape_cast %18 : vector<1x4x384xf32> to vector<4x384xf32>
    %c0_13 = arith.constant 0 : index
    %c3 = arith.constant 3 : index
    %20 = vector.load %arg3[%c0_13, %c3] : memref<4x9xf32, #tpu.memory_space<vmem>>, vector<4x1xf32>
    %21 = vector.broadcast %20 : vector<4x1xf32> to vector<4x384xf32>
    %22 = arith.mulf %19, %21 : vector<4x384xf32>
    %23 = arith.addf %17, %22 : vector<4x384xf32>
    %c0_14 = arith.constant 0 : index
    %c0_15 = arith.constant 0 : index
    %c128 = arith.constant 128 : index
    %24 = vector.load %arg1[%c0_14, %c0_15, %c128] : memref<1x4x640xf32, #tpu.memory_space<vmem>>, vector<1x4x384xf32>
    %25 = vector.shape_cast %24 : vector<1x4x384xf32> to vector<4x384xf32>
    %c0_16 = arith.constant 0 : index
    %c4 = arith.constant 4 : index
    %26 = vector.load %arg3[%c0_16, %c4] : memref<4x9xf32, #tpu.memory_space<vmem>>, vector<4x1xf32>
    %27 = vector.broadcast %26 : vector<4x1xf32> to vector<4x384xf32>
    %28 = arith.mulf %25, %27 : vector<4x384xf32>
    %29 = arith.addf %23, %28 : vector<4x384xf32>
    %c0_17 = arith.constant 0 : index
    %c0_18 = arith.constant 0 : index
    %c129 = arith.constant 129 : index
    %30 = vector.load %arg1[%c0_17, %c0_18, %c129] : memref<1x4x640xf32, #tpu.memory_space<vmem>>, vector<1x4x384xf32>
    %31 = vector.shape_cast %30 : vector<1x4x384xf32> to vector<4x384xf32>
    %c0_19 = arith.constant 0 : index
    %c5 = arith.constant 5 : index
    %32 = vector.load %arg3[%c0_19, %c5] : memref<4x9xf32, #tpu.memory_space<vmem>>, vector<4x1xf32>
    %33 = vector.broadcast %32 : vector<4x1xf32> to vector<4x384xf32>
    %34 = arith.mulf %31, %33 : vector<4x384xf32>
    %35 = arith.addf %29, %34 : vector<4x384xf32>
    %c0_20 = arith.constant 0 : index
    %c0_21 = arith.constant 0 : index
    %c145 = arith.constant 145 : index
    %36 = vector.load %arg1[%c0_20, %c0_21, %c145] : memref<1x4x640xf32, #tpu.memory_space<vmem>>, vector<1x4x384xf32>
    %37 = vector.shape_cast %36 : vector<1x4x384xf32> to vector<4x384xf32>
    %c0_22 = arith.constant 0 : index
    %c6 = arith.constant 6 : index
    %38 = vector.load %arg3[%c0_22, %c6] : memref<4x9xf32, #tpu.memory_space<vmem>>, vector<4x1xf32>
    %39 = vector.broadcast %38 : vector<4x1xf32> to vector<4x384xf32>
    %40 = arith.mulf %37, %39 : vector<4x384xf32>
    %41 = arith.addf %35, %40 : vector<4x384xf32>
    %c0_23 = arith.constant 0 : index
    %c0_24 = arith.constant 0 : index
    %c146 = arith.constant 146 : index
    %42 = vector.load %arg1[%c0_23, %c0_24, %c146] : memref<1x4x640xf32, #tpu.memory_space<vmem>>, vector<1x4x384xf32>
    %43 = vector.shape_cast %42 : vector<1x4x384xf32> to vector<4x384xf32>
    %c0_25 = arith.constant 0 : index
    %c7 = arith.constant 7 : index
    %44 = vector.load %arg3[%c0_25, %c7] : memref<4x9xf32, #tpu.memory_space<vmem>>, vector<4x1xf32>
    %45 = vector.broadcast %44 : vector<4x1xf32> to vector<4x384xf32>
    %46 = arith.mulf %43, %45 : vector<4x384xf32>
    %47 = arith.addf %41, %46 : vector<4x384xf32>
    %c0_26 = arith.constant 0 : index
    %c0_27 = arith.constant 0 : index
    %c147 = arith.constant 147 : index
    %48 = vector.load %arg1[%c0_26, %c0_27, %c147] : memref<1x4x640xf32, #tpu.memory_space<vmem>>, vector<1x4x384xf32>
    %49 = vector.shape_cast %48 : vector<1x4x384xf32> to vector<4x384xf32>
    %c0_28 = arith.constant 0 : index
    %c8 = arith.constant 8 : index
    %50 = vector.load %arg3[%c0_28, %c8] : memref<4x9xf32, #tpu.memory_space<vmem>>, vector<4x1xf32>
    %51 = vector.broadcast %50 : vector<4x1xf32> to vector<4x384xf32>
    %52 = arith.mulf %49, %51 : vector<4x384xf32>
    %53 = arith.addf %47, %52 : vector<4x384xf32>
    %c0_29 = arith.constant 0 : index
    %c0_30 = arith.constant 0 : index
    %54 = vector.load %arg4[%c0_29, %c0_30] : memref<4x4xf32, #tpu.memory_space<vmem>>, vector<4x1xf32>
    %55 = vector.extract_strided_slice %53 {offsets = [0, 0], sizes = [1, 384], strides = [1, 1]} : vector<4x384xf32> to vector<1x384xf32>
    %56 = vector.broadcast %54 : vector<4x1xf32> to vector<4x384xf32>
    %57 = vector.broadcast %55 : vector<1x384xf32> to vector<4x384xf32>
    %58 = arith.mulf %56, %57 : vector<4x384xf32>
    %c0_31 = arith.constant 0 : index
    %c1_32 = arith.constant 1 : index
    %59 = vector.load %arg4[%c0_31, %c1_32] : memref<4x4xf32, #tpu.memory_space<vmem>>, vector<4x1xf32>
    %60 = vector.extract_strided_slice %53 {offsets = [1, 0], sizes = [1, 384], strides = [1, 1]} : vector<4x384xf32> to vector<1x384xf32>
    %61 = vector.broadcast %59 : vector<4x1xf32> to vector<4x384xf32>
    %62 = vector.broadcast %60 : vector<1x384xf32> to vector<4x384xf32>
    %63 = arith.mulf %61, %62 : vector<4x384xf32>
    %64 = arith.addf %58, %63 : vector<4x384xf32>
    %c0_33 = arith.constant 0 : index
    %c2_34 = arith.constant 2 : index
    %65 = vector.load %arg4[%c0_33, %c2_34] : memref<4x4xf32, #tpu.memory_space<vmem>>, vector<4x1xf32>
    %66 = vector.extract_strided_slice %53 {offsets = [2, 0], sizes = [1, 384], strides = [1, 1]} : vector<4x384xf32> to vector<1x384xf32>
    %67 = vector.broadcast %65 : vector<4x1xf32> to vector<4x384xf32>
    %68 = vector.broadcast %66 : vector<1x384xf32> to vector<4x384xf32>
    %69 = arith.mulf %67, %68 : vector<4x384xf32>
    %70 = arith.addf %64, %69 : vector<4x384xf32>
    %c0_35 = arith.constant 0 : index
    %c3_36 = arith.constant 3 : index
    %71 = vector.load %arg4[%c0_35, %c3_36] : memref<4x4xf32, #tpu.memory_space<vmem>>, vector<4x1xf32>
    %72 = vector.extract_strided_slice %53 {offsets = [3, 0], sizes = [1, 384], strides = [1, 1]} : vector<4x384xf32> to vector<1x384xf32>
    %73 = vector.broadcast %71 : vector<4x1xf32> to vector<4x384xf32>
    %74 = vector.broadcast %72 : vector<1x384xf32> to vector<4x384xf32>
    %75 = arith.mulf %73, %74 : vector<4x384xf32>
    %76 = arith.addf %70, %75 : vector<4x384xf32>
    %c0_37 = arith.constant 0 : index
    %c0_38 = arith.constant 0 : index
    %77 = vector.load %arg5[%c0_37, %c0_38] : memref<4x1xf32, #tpu.memory_space<vmem>>, vector<4x1xf32>
    %78 = vector.broadcast %77 : vector<4x1xf32> to vector<4x384xf32>
    %79 = arith.addf %76, %78 : vector<4x384xf32>
    %80 = vector.broadcast %0 : vector<1x384xf32> to vector<4x384xf32>
    %81 = arith.mulf %79, %80 : vector<4x384xf32>
    %cst = arith.constant 0.000000e+00 : f32
    %82 = vector.broadcast %cst : f32 to vector<4x128xf32>
    %83 = tpu.concatenate %82, %81, %82 in 1 : vector<4x128xf32>, vector<4x384xf32>, vector<4x128xf32> -> vector<4x640xf32>
    %84 = vector.extract_strided_slice %83 {offsets = [0, 109], sizes = [4, 384], strides = [1, 1]} : vector<4x640xf32> to vector<4x384xf32>
    %c0_39 = arith.constant 0 : index
    %c0_40 = arith.constant 0 : index
    %85 = vector.load %arg6[%c0_39, %c0_40] : memref<4x9xf32, #tpu.memory_space<vmem>>, vector<4x1xf32>
    %86 = vector.broadcast %85 : vector<4x1xf32> to vector<4x384xf32>
    %87 = arith.mulf %84, %86 : vector<4x384xf32>
    %88 = vector.extract_strided_slice %83 {offsets = [0, 110], sizes = [4, 384], strides = [1, 1]} : vector<4x640xf32> to vector<4x384xf32>
    %c0_41 = arith.constant 0 : index
    %c1_42 = arith.constant 1 : index
    %89 = vector.load %arg6[%c0_41, %c1_42] : memref<4x9xf32, #tpu.memory_space<vmem>>, vector<4x1xf32>
    %90 = vector.broadcast %89 : vector<4x1xf32> to vector<4x384xf32>
    %91 = arith.mulf %88, %90 : vector<4x384xf32>
    %92 = arith.addf %87, %91 : vector<4x384xf32>
    %93 = vector.extract_strided_slice %83 {offsets = [0, 111], sizes = [4, 384], strides = [1, 1]} : vector<4x640xf32> to vector<4x384xf32>
    %c0_43 = arith.constant 0 : index
    %c2_44 = arith.constant 2 : index
    %94 = vector.load %arg6[%c0_43, %c2_44] : memref<4x9xf32, #tpu.memory_space<vmem>>, vector<4x1xf32>
    %95 = vector.broadcast %94 : vector<4x1xf32> to vector<4x384xf32>
    %96 = arith.mulf %93, %95 : vector<4x384xf32>
    %97 = arith.addf %92, %96 : vector<4x384xf32>
    %98 = vector.extract_strided_slice %83 {offsets = [0, 127], sizes = [4, 384], strides = [1, 1]} : vector<4x640xf32> to vector<4x384xf32>
    %c0_45 = arith.constant 0 : index
    %c3_46 = arith.constant 3 : index
    %99 = vector.load %arg6[%c0_45, %c3_46] : memref<4x9xf32, #tpu.memory_space<vmem>>, vector<4x1xf32>
    %100 = vector.broadcast %99 : vector<4x1xf32> to vector<4x384xf32>
    %101 = arith.mulf %98, %100 : vector<4x384xf32>
    %102 = arith.addf %97, %101 : vector<4x384xf32>
    %103 = vector.extract_strided_slice %83 {offsets = [0, 128], sizes = [4, 384], strides = [1, 1]} : vector<4x640xf32> to vector<4x384xf32>
    %c0_47 = arith.constant 0 : index
    %c4_48 = arith.constant 4 : index
    %104 = vector.load %arg6[%c0_47, %c4_48] : memref<4x9xf32, #tpu.memory_space<vmem>>, vector<4x1xf32>
    %105 = vector.broadcast %104 : vector<4x1xf32> to vector<4x384xf32>
    %106 = arith.mulf %103, %105 : vector<4x384xf32>
    %107 = arith.addf %102, %106 : vector<4x384xf32>
    %108 = vector.extract_strided_slice %83 {offsets = [0, 129], sizes = [4, 384], strides = [1, 1]} : vector<4x640xf32> to vector<4x384xf32>
    %c0_49 = arith.constant 0 : index
    %c5_50 = arith.constant 5 : index
    %109 = vector.load %arg6[%c0_49, %c5_50] : memref<4x9xf32, #tpu.memory_space<vmem>>, vector<4x1xf32>
    %110 = vector.broadcast %109 : vector<4x1xf32> to vector<4x384xf32>
    %111 = arith.mulf %108, %110 : vector<4x384xf32>
    %112 = arith.addf %107, %111 : vector<4x384xf32>
    %113 = vector.extract_strided_slice %83 {offsets = [0, 145], sizes = [4, 384], strides = [1, 1]} : vector<4x640xf32> to vector<4x384xf32>
    %c0_51 = arith.constant 0 : index
    %c6_52 = arith.constant 6 : index
    %114 = vector.load %arg6[%c0_51, %c6_52] : memref<4x9xf32, #tpu.memory_space<vmem>>, vector<4x1xf32>
    %115 = vector.broadcast %114 : vector<4x1xf32> to vector<4x384xf32>
    %116 = arith.mulf %113, %115 : vector<4x384xf32>
    %117 = arith.addf %112, %116 : vector<4x384xf32>
    %118 = vector.extract_strided_slice %83 {offsets = [0, 146], sizes = [4, 384], strides = [1, 1]} : vector<4x640xf32> to vector<4x384xf32>
    %c0_53 = arith.constant 0 : index
    %c7_54 = arith.constant 7 : index
    %119 = vector.load %arg6[%c0_53, %c7_54] : memref<4x9xf32, #tpu.memory_space<vmem>>, vector<4x1xf32>
    %120 = vector.broadcast %119 : vector<4x1xf32> to vector<4x384xf32>
    %121 = arith.mulf %118, %120 : vector<4x384xf32>
    %122 = arith.addf %117, %121 : vector<4x384xf32>
    %123 = vector.extract_strided_slice %83 {offsets = [0, 147], sizes = [4, 384], strides = [1, 1]} : vector<4x640xf32> to vector<4x384xf32>
    %c0_55 = arith.constant 0 : index
    %c8_56 = arith.constant 8 : index
    %124 = vector.load %arg6[%c0_55, %c8_56] : memref<4x9xf32, #tpu.memory_space<vmem>>, vector<4x1xf32>
    %125 = vector.broadcast %124 : vector<4x1xf32> to vector<4x384xf32>
    %126 = arith.mulf %123, %125 : vector<4x384xf32>
    %127 = arith.addf %122, %126 : vector<4x384xf32>
    %c0_57 = arith.constant 0 : index
    %c0_58 = arith.constant 0 : index
    %128 = vector.load %arg7[%c0_57, %c0_58] : memref<4x4xf32, #tpu.memory_space<vmem>>, vector<4x1xf32>
    %129 = vector.extract_strided_slice %127 {offsets = [0, 0], sizes = [1, 384], strides = [1, 1]} : vector<4x384xf32> to vector<1x384xf32>
    %130 = vector.broadcast %128 : vector<4x1xf32> to vector<4x384xf32>
    %131 = vector.broadcast %129 : vector<1x384xf32> to vector<4x384xf32>
    %132 = arith.mulf %130, %131 : vector<4x384xf32>
    %c0_59 = arith.constant 0 : index
    %c1_60 = arith.constant 1 : index
    %133 = vector.load %arg7[%c0_59, %c1_60] : memref<4x4xf32, #tpu.memory_space<vmem>>, vector<4x1xf32>
    %134 = vector.extract_strided_slice %127 {offsets = [1, 0], sizes = [1, 384], strides = [1, 1]} : vector<4x384xf32> to vector<1x384xf32>
    %135 = vector.broadcast %133 : vector<4x1xf32> to vector<4x384xf32>
    %136 = vector.broadcast %134 : vector<1x384xf32> to vector<4x384xf32>
    %137 = arith.mulf %135, %136 : vector<4x384xf32>
    %138 = arith.addf %132, %137 : vector<4x384xf32>
    %c0_61 = arith.constant 0 : index
    %c2_62 = arith.constant 2 : index
    %139 = vector.load %arg7[%c0_61, %c2_62] : memref<4x4xf32, #tpu.memory_space<vmem>>, vector<4x1xf32>
    %140 = vector.extract_strided_slice %127 {offsets = [2, 0], sizes = [1, 384], strides = [1, 1]} : vector<4x384xf32> to vector<1x384xf32>
    %141 = vector.broadcast %139 : vector<4x1xf32> to vector<4x384xf32>
    %142 = vector.broadcast %140 : vector<1x384xf32> to vector<4x384xf32>
    %143 = arith.mulf %141, %142 : vector<4x384xf32>
    %144 = arith.addf %138, %143 : vector<4x384xf32>
    %c0_63 = arith.constant 0 : index
    %c3_64 = arith.constant 3 : index
    %145 = vector.load %arg7[%c0_63, %c3_64] : memref<4x4xf32, #tpu.memory_space<vmem>>, vector<4x1xf32>
    %146 = vector.extract_strided_slice %127 {offsets = [3, 0], sizes = [1, 384], strides = [1, 1]} : vector<4x384xf32> to vector<1x384xf32>
    %147 = vector.broadcast %145 : vector<4x1xf32> to vector<4x384xf32>
    %148 = vector.broadcast %146 : vector<1x384xf32> to vector<4x384xf32>
    %149 = arith.mulf %147, %148 : vector<4x384xf32>
    %150 = arith.addf %144, %149 : vector<4x384xf32>
    %c0_65 = arith.constant 0 : index
    %c0_66 = arith.constant 0 : index
    %151 = vector.load %arg8[%c0_65, %c0_66] : memref<4x1xf32, #tpu.memory_space<vmem>>, vector<4x1xf32>
    %152 = vector.broadcast %151 : vector<4x1xf32> to vector<4x384xf32>
    %153 = arith.addf %150, %152 : vector<4x384xf32>
    %c0_67 = arith.constant 0 : index
    %c0_68 = arith.constant 0 : index
    %c128_69 = arith.constant 128 : index
    %154 = vector.load %arg1[%c0_67, %c0_68, %c128_69] : memref<1x4x640xf32, #tpu.memory_space<vmem>>, vector<1x4x384xf32>
    %155 = vector.shape_cast %154 : vector<1x4x384xf32> to vector<4x384xf32>
    %156 = arith.addf %153, %155 : vector<4x384xf32>
    %cst_70 = arith.constant 0.000000e+00 : f32
    %157 = vector.broadcast %cst_70 : f32 to vector<4x384xf32>
    %158 = arith.maximumf %156, %157 : vector<4x384xf32>
    %c0_71 = arith.constant 0 : index
    %c0_72 = arith.constant 0 : index
    %c0_73 = arith.constant 0 : index
    %159 = vector.load %arg9[%c0_71, %c0_72, %c0_73] : memref<1x4x384xf32, #tpu.memory_space<vmem>>, vector<1x4x384xf32>
    %160 = vector.shape_cast %159 : vector<1x4x384xf32> to vector<4x384xf32>
    %161 = vector.shape_cast %158 : vector<4x384xf32> to vector<1x4x384xf32>
    tpu.vector_store %arg9[%c0_71, %c0_72, %c0_73], %161 {strides = array<i32>} : memref<1x4x384xf32, #tpu.memory_space<vmem>>, vector<1x4x384xf32>,
    return
  }
  func.func @transform_0(%arg0: i32) -> (i32, i32, i32) {
    %c0_i32 = arith.constant 0 : i32
    %c0_i32_0 = arith.constant 0 : i32
    %c0_i32_1 = arith.constant 0 : i32
    return %arg0, %c0_i32, %c0_i32_0 : i32, i32, i32
  }
  func.func @transform_1(%arg0: i32) -> (i32, i32) {
    %c0_i32 = arith.constant 0 : i32
    %c0_i32_0 = arith.constant 0 : i32
    %c0_i32_1 = arith.constant 0 : i32
    return %c0_i32, %c0_i32_0 : i32, i32
  }
  func.func @transform_2(%arg0: i32) -> (i32, i32) {
    %c0_i32 = arith.constant 0 : i32
    %c0_i32_0 = arith.constant 0 : i32
    %c0_i32_1 = arith.constant 0 : i32
    return %c0_i32, %c0_i32_0 : i32, i32
  }
  func.func @transform_3(%arg0: i32) -> (i32, i32) {
    %c0_i32 = arith.constant 0 : i32
    %c0_i32_0 = arith.constant 0 : i32
    %c0_i32_1 = arith.constant 0 : i32
    return %c0_i32, %c0_i32_0 : i32, i32
  }
  func.func @transform_4(%arg0: i32) -> (i32, i32) {
    %c0_i32 = arith.constant 0 : i32
    %c0_i32_0 = arith.constant 0 : i32
    %c0_i32_1 = arith.constant 0 : i32
    return %c0_i32, %c0_i32_0 : i32, i32
  }
  func.func @transform_5(%arg0: i32) -> (i32, i32) {
    %c0_i32 = arith.constant 0 : i32
    %c0_i32_0 = arith.constant 0 : i32
    %c0_i32_1 = arith.constant 0 : i32
    return %c0_i32, %c0_i32_0 : i32, i32
  }
  func.func @transform_6(%arg0: i32) -> (i32, i32) {
    %c0_i32 = arith.constant 0 : i32
    %c0_i32_0 = arith.constant 0 : i32
    %c0_i32_1 = arith.constant 0 : i32
    return %c0_i32, %c0_i32_0 : i32, i32
  }
  func.func @transform_7(%arg0: i32) -> (i32, i32) {
    %c0_i32 = arith.constant 0 : i32
    %c0_i32_0 = arith.constant 0 : i32
    %c0_i32_1 = arith.constant 0 : i32
    return %c0_i32, %c0_i32_0 : i32, i32
  }
  func.func @transform_8(%arg0: i32) -> (i32, i32, i32) {
    %c0_i32 = arith.constant 0 : i32
    %c0_i32_0 = arith.constant 0 : i32
    %c0_i32_1 = arith.constant 0 : i32
    return %arg0, %c0_i32, %c0_i32_0 : i32, i32, i32
  }
}

</mosaic_0001>

<llo_original>
// kernel: block_dual_forward.1
$region0: #{block_dual_forward.1}
  #allocation0 [shape = 'u32[]', space=smem, size = 0x4, offset = 0x4, fixed_abs, tag = 'smem constant byte address 0x4 - core index']
  #allocation1 [shape = 'u32[144,128]{1,0:T(1,128)}', space=vmem, size = 0x12000, scoped, tag = 'internal scratch']
  %s0 = inlined_call_operand.vmem [shape: f32[2,4,640], index: 0, kind: input, shape index: {}]
  %s1 = inlined_call_operand.vmem [shape: f32[1,384], index: 1, kind: input, shape index: {}]
  %s2 = inlined_call_operand.vmem [shape: f32[4,9], index: 2, kind: input, shape index: {}]
  %s3 = inlined_call_operand.vmem [shape: f32[4,4], index: 3, kind: input, shape index: {}]
  %s4 = inlined_call_operand.vmem [shape: f32[4,1], index: 4, kind: input, shape index: {}]
  %s5 = inlined_call_operand.vmem [shape: f32[4,9], index: 5, kind: input, shape index: {}]
  %s6 = inlined_call_operand.vmem [shape: f32[4,4], index: 6, kind: input, shape index: {}]
  %s7 = inlined_call_operand.vmem [shape: f32[4,1], index: 7, kind: input, shape index: {}]
  %s8 = inlined_call_operand.vmem [shape: f32[2,4,384], index: 8, kind: output, shape index: {}]
  %s9 = sld [smem:[#allocation0]]
  $region65: #{block_dual_forward.1} parent=0
    _
  %s11 = ssub.s32 1, %s9
  %s12 = scalar_select 0, %s11, %s9
  loop: start=0, step=1, limit=4
  $region2: #{block_dual_forward.1} parent=0 // loop_pre_header
    _
  $region3: #{block_dual_forward.1} parent=0 // loop_header
    %s14 = sphi 0, %s18
    %p15 = scmp.ge.s32.totalorder %s14, 4
    %s24 = sphi 0, %s26
    %s27 = sphi 0, %s24
    %s28 = sphi 0, %s27
    %s44 = sphi 0, %s28
    %s48 = sphi 0, %s48
    %s50 = sphi 0, %s48
    %s51 = sphi 0, %s50
    %s65 = sphi 0, %s51
    %s69 = sphi 0, %s69
    %s71 = sphi 0, %s69
    %s72 = sphi 0, %s71
    %s86 = sphi 0, %s72
    %s90 = sphi 0, %s90
    %s92 = sphi 0, %s90
    %s93 = sphi 0, %s92
    %s107 = sphi 0, %s93
    %s111 = sphi 0, %s111
    %s113 = sphi 0, %s111
    %s114 = sphi 0, %s113
    %s128 = sphi 0, %s114
    %s132 = sphi 0, %s132
    %s134 = sphi 0, %s132
    %s135 = sphi 0, %s134
    %s149 = sphi 0, %s135
    %s153 = sphi 0, %s153
    %s155 = sphi 0, %s153
    %s156 = sphi 0, %s155
    %s170 = sphi 0, %s156
    %s174 = sphi 0, %s174
    %s176 = sphi 0, %s174
    %s177 = sphi 0, %s176
    %s191 = sphi 0, %s177
    %s197 = sphi 0, %s199
    %s200 = sphi 0, %s197
    %s201 = sphi 0, %s200
    %s217 = sphi 0, %s201
  $region4: #{block_dual_forward.1} parent=0 // loop_header_branch
    %17 = sbr.rel (%p15) target = $region8
  $region5: #{block_dual_forward.1} parent=0 // loop_body
    %s19 = ssub.s32 %s14, 1
    %s20 = ssub.s32 %s14, 2
    %s21 = sadd.s32 %s14, 1
    %s22 = ssub.s32 %s14, %s21
    %p23 = scmp.eq.s32.totalorder %s22, 0
    %s25 = sadd.s32 %s24, 1
    %s26 = scalar_select %p23, %s24, %s25
    %p29 = pneg %p23
    %p30 = scmp.eq.s32.totalorder %s14, 1
    %p31 = por %p29, %p30
    %p32 = scmp.ne.s32.totalorder %s24, %s27
    %p33 = scmp.eq.s32.totalorder %s14, 0
    %p34 = por %p32, %p33
    %p35 = scmp.ne.s32.totalorder %s24, %s27
    %p36 = scmp.eq.s32.totalorder %s19, 1
    %p37 = por %p35, %p36
    %p38 = scmp.ne.s32.totalorder %s27, %s28
    %p39 = scmp.eq.s32.totalorder %s19, 0
    %p40 = por %p38, %p39
    %p41 = scmp.ne.s32.totalorder %s27, %s28
    %p42 = scmp.eq.s32.totalorder %s20, 1
    %p43 = por %p41, %p42
    %p45 = scmp.ne.s32.totalorder %s28, %s44
    %p46 = scmp.eq.s32.totalorder %s20, 0
    %p47 = por %p45, %p46
    %s49 = sadd.s32 %s48, 1
    %p52 = scmp.eq.s32.totalorder %s14, 1
    %p53 = scmp.ne.s32.totalorder %s48, %s50
    %p54 = scmp.eq.s32.totalorder %s14, 0
    %p55 = por %p53, %p54
    %p56 = scmp.ne.s32.totalorder %s48, %s50
    %p57 = scmp.eq.s32.totalorder %s19, 1
    %p58 = por %p56, %p57
    %p59 = scmp.ne.s32.totalorder %s50, %s51
    %p60 = scmp.eq.s32.totalorder %s19, 0
    %p61 = por %p59, %p60
    %p62 = scmp.ne.s32.totalorder %s50, %s51
    %p63 = scmp.eq.s32.totalorder %s20, 1
    %p64 = por %p62, %p63
    %p66 = scmp.ne.s32.totalorder %s51, %s65
    %p67 = scmp.eq.s32.totalorder %s20, 0
    %p68 = por %p66, %p67
    %s70 = sadd.s32 %s69, 1
    %p73 = scmp.eq.s32.totalorder %s14, 1
    %p74 = scmp.ne.s32.totalorder %s69, %s71
    %p75 = scmp.eq.s32.totalorder %s14, 0
    %p76 = por %p74, %p75
    %p77 = scmp.ne.s32.totalorder %s69, %s71
    %p78 = scmp.eq.s32.totalorder %s19, 1
    %p79 = por %p77, %p78
    %p80 = scmp.ne.s32.totalorder %s71, %s72
    %p81 = scmp.eq.s32.totalorder %s19, 0
    %p82 = por %p80, %p81
    %p83 = scmp.ne.s32.totalorder %s71, %s72
    %p84 = scmp.eq.s32.totalorder %s20, 1
    %p85 = por %p83, %p84
    %p87 = scmp.ne.s32.totalorder %s72, %s86
    %p88 = scmp.eq.s32.totalorder %s20, 0
    %p89 = por %p87, %p88
    %s91 = sadd.s32 %s90, 1
    %p94 = scmp.eq.s32.totalorder %s14, 1
    %p95 = scmp.ne.s32.totalorder %s90, %s92
    %p96 = scmp.eq.s32.totalorder %s14, 0
    %p97 = por %p95, %p96
    %p98 = scmp.ne.s32.totalorder %s90, %s92
    %p99 = scmp.eq.s32.totalorder %s19, 1
    %p100 = por %p98, %p99
    %p101 = scmp.ne.s32.totalorder %s92, %s93
    %p102 = scmp.eq.s32.totalorder %s19, 0
    %p103 = por %p101, %p102
    %p104 = scmp.ne.s32.totalorder %s92, %s93
    %p105 = scmp.eq.s32.totalorder %s20, 1
    %p106 = por %p104, %p105
    %p108 = scmp.ne.s32.totalorder %s93, %s107
    %p109 = scmp.eq.s32.totalorder %s20, 0
    %p110 = por %p108, %p109
    %s112 = sadd.s32 %s111, 1
    %p115 = scmp.eq.s32.totalorder %s14, 1
    %p116 = scmp.ne.s32.totalorder %s111, %s113
    %p117 = scmp.eq.s32.totalorder %s14, 0
    %p118 = por %p116, %p117
    %p119 = scmp.ne.s32.totalorder %s111, %s113
    %p120 = scmp.eq.s32.totalorder %s19, 1
    %p121 = por %p119, %p120
    %p122 = scmp.ne.s32.totalorder %s113, %s114
    %p123 = scmp.eq.s32.totalorder %s19, 0
    %p124 = por %p122, %p123
    %p125 = scmp.ne.s32.totalorder %s113, %s114
    %p126 = scmp.eq.s32.totalorder %s20, 1
    %p127 = por %p125, %p126
    %p129 = scmp.ne.s32.totalorder %s114, %s128
    %p130 = scmp.eq.s32.totalorder %s20, 0
    %p131 = por %p129, %p130
    %s133 = sadd.s32 %s132, 1
    %p136 = scmp.eq.s32.totalorder %s14, 1
    %p137 = scmp.ne.s32.totalorder %s132, %s134
    %p138 = scmp.eq.s32.totalorder %s14, 0
    %p139 = por %p137, %p138
    %p140 = scmp.ne.s32.totalorder %s132, %s134
    %p141 = scmp.eq.s32.totalorder %s19, 1
    %p142 = por %p140, %p141
    %p143 = scmp.ne.s32.totalorder %s134, %s135
    %p144 = scmp.eq.s32.totalorder %s19, 0
    %p145 = por %p143, %p144
    %p146 = scmp.ne.s32.totalorder %s134, %s135
    %p147 = scmp.eq.s32.totalorder %s20, 1
    %p148 = por %p146, %p147
    %p150 = scmp.ne.s32.totalorder %s135, %s149
    %p151 = scmp.eq.s32.totalorder %s20, 0
    %p152 = por %p150, %p151
    %s154 = sadd.s32 %s153, 1
    %p157 = scmp.eq.s32.totalorder %s14, 1
    %p158 = scmp.ne.s32.totalorder %s153, %s155
    %p159 = scmp.eq.s32.totalorder %s14, 0
    %p160 = por %p158, %p159
    %p161 = scmp.ne.s32.totalorder %s153, %s155
    %p162 = scmp.eq.s32.totalorder %s19, 1
    %p163 = por %p161, %p162
    %p164 = scmp.ne.s32.totalorder %s155, %s156
    %p165 = scmp.eq.s32.totalorder %s19, 0
    %p166 = por %p164, %p165
    %p167 = scmp.ne.s32.totalorder %s155, %s156
    %p168 = scmp.eq.s32.totalorder %s20, 1
    %p169 = por %p167, %p168
    %p171 = scmp.ne.s32.totalorder %s156, %s170
    %p172 = scmp.eq.s32.totalorder %s20, 0
    %p173 = por %p171, %p172
    %s175 = sadd.s32 %s174, 1
    %p178 = scmp.eq.s32.totalorder %s14, 1
    %p179 = scmp.ne.s32.totalorder %s174, %s176
    %p180 = scmp.eq.s32.totalorder %s14, 0
    %p181 = por %p179, %p180
    %p182 = scmp.ne.s32.totalorder %s174, %s176
    %p183 = scmp.eq.s32.totalorder %s19, 1
    %p184 = por %p182, %p183
    %p185 = scmp.ne.s32.totalorder %s176, %s177
    %p186 = scmp.eq.s32.totalorder %s19, 0
    %p187 = por %p185, %p186
    %p188 = scmp.ne.s32.totalorder %s176, %s177
    %p189 = scmp.eq.s32.totalorder %s20, 1
    %p190 = por %p188, %p189
    %p192 = scmp.ne.s32.totalorder %s177, %s191
    %p193 = scmp.eq.s32.totalorder %s20, 0
    %p194 = por %p192, %p193
    %s195 = ssub.s32 %s14, %s21
    %p196 = scmp.eq.s32.totalorder %s195, 0
    %s198 = sadd.s32 %s197, 1
    %s199 = scalar_select %p196, %s197, %s198
    %p202 = pneg %p196
    %p203 = scmp.eq.s32.totalorder %s14, 1
    %p204 = por %p202, %p203
    %p205 = scmp.ne.s32.totalorder %s197, %s200
    %p206 = scmp.eq.s32.totalorder %s14, 0
    %p207 = por %p205, %p206
    %p208 = scmp.ne.s32.totalorder %s197, %s200
    %p209 = scmp.eq.s32.totalorder %s19, 1
    %p210 = por %p208, %p209
    %p211 = scmp.ne.s32.totalorder %s200, %s201
    %p212 = scmp.eq.s32.totalorder %s19, 0
    %p213 = por %p211, %p212
    %p214 = scmp.ne.s32.totalorder %s200, %s201
    %p215 = scmp.eq.s32.totalorder %s20, 1
    %p216 = por %p214, %p215
    %p218 = scmp.ne.s32.totalorder %s201, %s217
    %p219 = scmp.eq.s32.totalorder %s20, 0
    %p220 = por %p218, %p219
    %p221 = scmp.le.s32.totalorder 1, %s14
    %p222 = scmp.lt.s32.totalorder %s14, 3
    %p223 = pnand %p221, %p222
    %p224 = pneg %p223
    // Predicated region
    $region9: #{block_dual_forward.1} parent=5 // pred_check
      _
    $region10: #{block_dual_forward.1} parent=5 // pred_check_branch
      %226 = sbr.rel (%p223) target = $region12
    $region11: #{block_dual_forward.1} parent=5 // pred_region
      %s227 = ssub.s32 %s14, 1
      // Predicated region
      $region13: #{block_dual_forward.1} parent=11 // pred_check
        %p228 = pneg %p61
      $region14: #{block_dual_forward.1} parent=11 // pred_check_branch
        %230 = sbr.rel (%p228) target = $region16
      $region15: #{block_dual_forward.1} parent=11 // pred_region
        _
      $region16: #{block_dual_forward.1} parent=11 // pred_fallthru
        _
      // Predicated region
      $region17: #{block_dual_forward.1} parent=11 // pred_check
        %p231 = pneg %p82
      $region18: #{block_dual_forward.1} parent=11 // pred_check_branch
        %233 = sbr.rel (%p231) target = $region20
      $region19: #{block_dual_forward.1} parent=11 // pred_region
        _
      $region20: #{block_dual_forward.1} parent=11 // pred_fallthru
        _
      // Predicated region
      $region21: #{block_dual_forward.1} parent=11 // pred_check
        %p234 = pneg %p103
      $region22: #{block_dual_forward.1} parent=11 // pred_check_branch
        %236 = sbr.rel (%p234) target = $region24
      $region23: #{block_dual_forward.1} parent=11 // pred_region
        _
      $region24: #{block_dual_forward.1} parent=11 // pred_fallthru
        _
      // Predicated region
      $region25: #{block_dual_forward.1} parent=11 // pred_check
        %p237 = pneg %p124
      $region26: #{block_dual_forward.1} parent=11 // pred_check_branch
        %239 = sbr.rel (%p237) target = $region28
      $region27: #{block_dual_forward.1} parent=11 // pred_region
        _
      $region28: #{block_dual_forward.1} parent=11 // pred_fallthru
        _
      // Predicated region
      $region29: #{block_dual_forward.1} parent=11 // pred_check
        %p240 = pneg %p145
      $region30: #{block_dual_forward.1} parent=11 // pred_check_branch
        %242 = sbr.rel (%p240) target = $region32
      $region31: #{block_dual_forward.1} parent=11 // pred_region
        _
      $region32: #{block_dual_forward.1} parent=11 // pred_fallthru
        _
      // Predicated region
      $region33: #{block_dual_forward.1} parent=11 // pred_check
        %p243 = pneg %p166
      $region34: #{block_dual_forward.1} parent=11 // pred_check_branch
        %245 = sbr.rel (%p243) target = $region36
      $region35: #{block_dual_forward.1} parent=11 // pred_region
        _
      $region36: #{block_dual_forward.1} parent=11 // pred_fallthru
        _
      // Predicated region
      $region37: #{block_dual_forward.1} parent=11 // pred_check
        %p246 = pneg %p187
      $region38: #{block_dual_forward.1} parent=11 // pred_check_branch
        %248 = sbr.rel (%p246) target = $region40
      $region39: #{block_dual_forward.1} parent=11 // pred_region
        _
      $region40: #{block_dual_forward.1} parent=11 // pred_fallthru
        _
    $region12: #{block_dual_forward.1} parent=5 // pred_fallthru
      _
    %p249 = scmp.lt.s32.totalorder %s14, 2
    // Predicated region
    $region41: #{block_dual_forward.1} parent=5 // pred_check
      %p250 = pneg %p249
    $region42: #{block_dual_forward.1} parent=5 // pred_check_branch
      %252 = sbr.rel (%p250) target = $region44
    $region43: #{block_dual_forward.1} parent=5 // pred_region
      // Predicated region
      $region45: #{block_dual_forward.1} parent=43 // pred_check
        %p253 = pneg %p34
      $region46: #{block_dual_forward.1} parent=43 // pred_check_branch
        %255 = sbr.rel (%p253) target = $region48
      $region47: #{block_dual_forward.1} parent=43 // pred_region
        %p256 = scmp.lt.s32.totalorder %s14, 1
        %s257 = scalar_select %p256, %s14, 1
        %s258 = smul.addr %s257, 5
        %s259 = smul.addr %s258, 4
        %s260 = scalar_lea.vmem %s0, %s259
      $region48: #{block_dual_forward.1} parent=43 // pred_fallthru
        _
    $region44: #{block_dual_forward.1} parent=5 // pred_fallthru
      _
    %p261 = scmp.le.s32.totalorder 1, %s14
    %p262 = scmp.lt.s32.totalorder %s14, 3
    %p263 = pnand %p261, %p262
    %p264 = pneg %p263
    // Predicated region
    $region49: #{block_dual_forward.1} parent=5 // pred_check
      _
    $region50: #{block_dual_forward.1} parent=5 // pred_check_branch
      %266 = sbr.rel (%p263) target = $region52
    $region51: #{block_dual_forward.1} parent=5 // pred_region
      %s267 = ssub.s32 %s14, 1
      %p268 = scmp.lt.s32.totalorder %s19, 1
      %s269 = scalar_select %p268, %s19, 1
      %s270 = smul.addr %s269, 5
      %s271 = smul.addr %s270, 4
      %s272 = scalar_lea.vmem %s0, %s271
      %p273 = pneg %p40
      %p274 = pneg %p37
      %p275 = pneg %p61
      %p276 = pneg %p58
      %p277 = pneg %p82
      %p278 = pneg %p79
      %p279 = pneg %p103
      %p280 = pneg %p100
      %p281 = pneg %p124
      %p282 = pneg %p121
      %p283 = pneg %p145
      %p284 = pneg %p142
      %p285 = pneg %p166
      %p286 = pneg %p163
      %p287 = pneg %p187
      %p288 = pneg %p184
      %p289 = pneg %p213
      %p290 = pneg %p210
      %p291 = scmp.lt.s32.totalorder %s19, 1
      %s292 = scalar_select %p291, %s19, 1
      %s293 = smul.addr %s292, 3
      %s294 = smul.addr %s293, 4
      %s295 = scalar_lea.vmem %s8, %s294
      %p296 = scmp.lt.s32.totalorder %s19, 1
      %s297 = scalar_select %p296, %s19, 1
      %s298 = smul.addr %s297, 5
      %s299 = smul.addr %s298, 4
      %s300 = scalar_lea.vmem %s0, %s299
      %p301 = scmp.lt.s32.totalorder %s19, 1
      %s302 = scalar_select %p301, %s19, 1
      %s303 = smul.addr %s302, 3
      %s304 = smul.addr %s303, 4
      %s305 = scalar_lea.vmem %s8, %s304
      %v306 = vld [vmem:[%s1] sm:$0x7]
      %v307 = vld [vmem:[%s300] sm:$0xff]
      %v308 = vld [vmem:[%s300 + $0x8] sm:$0xff]
      %v309 = vld [vmem:[%s2] sm:$0xf]
      %311 = vset.pattern.permute.xlu0 0
      %312 = vperm.xlu0 %311, %v309
      %v313 = vpop.permute.xlu0 %312
      %v315 = vunpack.c.l.s4 839922192
      %v316 = vunpack.c.0.s8 %v315
      %v317 = vlaneseq
      %v318 = vshrl.u32 %v317, 7
      %v319 = vsub.s32 %v316, %v318
      %v320 = vrot.slane %v313, %v319
      %v322 = vmul.f32 %v307, %v320
      %v323 = vmul.f32 %v308, %v320
      %324 = vset.pattern.permute.xlu0 1
      %325 = vperm.xlu0 %324, %v309
      %v326 = vpop.permute.xlu0 %325
      %v328 = vunpack.c.l.s4 839922192
      %v329 = vunpack.c.0.s8 %v328
      %v330 = vlaneseq
      %v331 = vshrl.u32 %v330, 7
      %v332 = vsub.s32 %v329, %v331
      %v333 = vrot.slane %v326, %v332
      %v335 = vmul.f32 %v307, %v333
      %v336 = vmul.f32 %v308, %v333
      %339 = vrot.lane.b32.xlu0 %v335, 127
      %v340 = vpop.permute.xlu0 %339
      %341 = vrot.lane.b32.xlu0 %v336, 127
      %v342 = vpop.permute.xlu0 %341
      %v343 = vrot.slane %v340, 4
      %v344 = vrot.slane %v342, 4
      %vm345 = vcmask 1043456
      %v346 = vsel %vm345, %v343, %v344
      %vm347 = vcmask 1039360
      %v348 = vsel %vm347, %v340, %v346
      %v349 = vsel %vm347, %v342, %v344
      %v352 = vadd.f32 %v322, %v348
      %v353 = vadd.f32 %v323, %v349
      %354 = vset.pattern.permute.xlu0 2
      %355 = vperm.xlu0 %354, %v309
      %v356 = vpop.permute.xlu0 %355
      %v358 = vunpack.c.l.s4 839922192
      %v359 = vunpack.c.0.s8 %v358
      %v360 = vlaneseq
      %v361 = vshrl.u32 %v360, 7
      %v362 = vsub.s32 %v359, %v361
      %v363 = vrot.slane %v356, %v362
      %v365 = vmul.f32 %v307, %v363
      %v366 = vmul.f32 %v308, %v363
      %369 = vrot.lane.b32.xlu0 %v365, 126
      %v370 = vpop.permute.xlu0 %369
      %371 = vrot.lane.b32.xlu0 %v366, 126
      %v372 = vpop.permute.xlu0 %371
      %v373 = vrot.slane %v370, 4
      %v374 = vrot.slane %v372, 4
      %v375 = vsel %vm345, %v373, %v374
      %vm376 = vcmask 1031168
      %v377 = vsel %vm376, %v370, %v375
      %v378 = vsel %vm376, %v372, %v374
      %v381 = vadd.f32 %v352, %v377
      %v382 = vadd.f32 %v353, %v378
      %383 = vset.pattern.permute.xlu0 3
      %384 = vperm.xlu0 %383, %v309
      %v385 = vpop.permute.xlu0 %384
      %v387 = vunpack.c.l.s4 839922192
      %v388 = vunpack.c.0.s8 %v387
      %v389 = vlaneseq
      %v390 = vshrl.u32 %v389, 7
      %v391 = vsub.s32 %v388, %v390
      %v392 = vrot.slane %v385, %v391
      %v394 = vmul.f32 %v307, %v392
      %v395 = vmul.f32 %v308, %v392
      %398 = vrot.lane.b32.xlu0 %v394, 110
      %v399 = vpop.permute.xlu0 %398
      %400 = vrot.lane.b32.xlu0 %v395, 110
      %v401 = vpop.permute.xlu0 %400
      %v402 = vrot.slane %v399, 4
      %v403 = vrot.slane %v401, 4
      %v404 = vsel %vm345, %v402, %v403
      %vm405 = vcmask 900096
      %v406 = vsel %vm405, %v399, %v404
      %v407 = vsel %vm405, %v401, %v403
      %v410 = vadd.f32 %v381, %v406
      %v411 = vadd.f32 %v382, %v407
      %v412 = vld [vmem:[%s300 + $0x4] sm:$0xff]
      %v413 = vld [vmem:[%s300 + $0xc] sm:$0xf]
      %414 = vset.pattern.permute.xlu0 4
      %415 = vperm.xlu0 %414, %v309
      %v416 = vpop.permute.xlu0 %415
      %v418 = vunpack.c.l.s4 839922192
      %v419 = vunpack.c.0.s8 %v418
      %v420 = vlaneseq
      %v421 = vshrl.u32 %v420, 7
      %v422 = vsub.s32 %v419, %v421
      %v423 = vrot.slane %v416, %v422
      %v425 = vmul.f32 %v412, %v423
      %v426 = vmul.f32 %v413, %v423
      %429 = vrot.lane.b32.xlu0 %v425, 109
      %v430 = vpop.permute.xlu0 %429
      %431 = vrot.lane.b32.xlu0 %v426, 109
      %v432 = vpop.permute.xlu0 %431
      %v433 = vrot.slane %v430, 4
      %v434 = vrot.slane %v432, 4
      %vm435 = vcmask 891904
      %v436 = vsel %vm435, %v433, %v430
      %v437 = vsel %vm345, %v433, %v434
      %v438 = vsel %vm435, %v437, %v432
      %v441 = vadd.f32 %v410, %v436
      %v442 = vadd.f32 %v411, %v438
      %v443 = vld [vmem:[%s300 + $0x4] sm:$0xff]
      %v444 = vld [vmem:[%s300 + $0xc] sm:$0xff]
      %445 = vset.pattern.permute.xlu0 5
      %446 = vperm.xlu0 %445, %v309
      %v447 = vpop.permute.xlu0 %446
      %v449 = vunpack.c.l.s4 839922192
      %v450 = vunpack.c.0.s8 %v449
      %v451 = vlaneseq
      %v452 = vshrl.u32 %v451, 7
      %v453 = vsub.s32 %v450, %v452
      %v454 = vrot.slane %v447, %v453
      %v456 = vmul.f32 %v443, %v454
      %v457 = vmul.f32 %v444, %v454
      %460 = vrot.lane.b32.xlu0 %v456, 108
      %v461 = vpop.permute.xlu0 %460
      %462 = vrot.lane.b32.xlu0 %v457, 108
      %v463 = vpop.permute.xlu0 %462
      %v464 = vrot.slane %v461, 4
      %v465 = vrot.slane %v463, 4
      %vm466 = vcmask 883712
      %v467 = vsel %vm466, %v464, %v461
      %v468 = vsel %vm345, %v464, %v465
      %v469 = vsel %vm466, %v468, %v463
      %v472 = vadd.f32 %v441, %v467
      %v473 = vadd.f32 %v442, %v469
      %474 = vset.pattern.permute.xlu0 6
      %475 = vperm.xlu0 %474, %v309
      %v476 = vpop.permute.xlu0 %475
      %v478 = vunpack.c.l.s4 839922192
      %v479 = vunpack.c.0.s8 %v478
      %v480 = vlaneseq
      %v481 = vshrl.u32 %v480, 7
      %v482 = vsub.s32 %v479, %v481
      %v483 = vrot.slane %v476, %v482
      %v485 = vmul.f32 %v443, %v483
      %v486 = vmul.f32 %v444, %v483
      %489 = vrot.lane.b32.xlu0 %v485, 92
      %v490 = vpop.permute.xlu0 %489
      %491 = vrot.lane.b32.xlu0 %v486, 92
      %v492 = vpop.permute.xlu0 %491
      %v493 = vrot.slane %v490, 4
      %v494 = vrot.slane %v492, 4
      %vm495 = vcmask 752640
      %v496 = vsel %vm495, %v493, %v490
      %v497 = vsel %vm345, %v493, %v494
      %v498 = vsel %vm495, %v497, %v492
      %v501 = vadd.f32 %v472, %v496
      %v502 = vadd.f32 %v473, %v498
      %503 = vset.pattern.permute.xlu0 7
      %504 = vperm.xlu0 %503, %v309
      %v505 = vpop.permute.xlu0 %504
      %v507 = vunpack.c.l.s4 839922192
      %v508 = vunpack.c.0.s8 %v507
      %v509 = vlaneseq
      %v510 = vshrl.u32 %v509, 7
      %v511 = vsub.s32 %v508, %v510
      %v512 = vrot.slane %v505, %v511
      %v514 = vmul.f32 %v443, %v512
      %v515 = vmul.f32 %v444, %v512
      %518 = vrot.lane.b32.xlu0 %v514, 91
      %v519 = vpop.permute.xlu0 %518
      %520 = vrot.lane.b32.xlu0 %v515, 91
      %v521 = vpop.permute.xlu0 %520
      %v522 = vrot.slane %v519, 4
      %v523 = vrot.slane %v521, 4
      %vm524 = vcmask 744448
      %v525 = vsel %vm524, %v522, %v519
      %v526 = vsel %vm345, %v522, %v523
      %v527 = vsel %vm524, %v526, %v521
      %v530 = vadd.f32 %v501, %v525
      %v531 = vadd.f32 %v502, %v527
      %532 = vset.pattern.permute.xlu0 8
      %533 = vperm.xlu0 %532, %v309
      %v534 = vpop.permute.xlu0 %533
      %v536 = vunpack.c.l.s4 839922192
      %v537 = vunpack.c.0.s8 %v536
      %v538 = vlaneseq
      %v539 = vshrl.u32 %v538, 7
      %v540 = vsub.s32 %v537, %v539
      %v541 = vrot.slane %v534, %v540
      %v543 = vmul.f32 %v443, %v541
      %v544 = vmul.f32 %v444, %v541
      %547 = vrot.lane.b32.xlu0 %v543, 90
      %v548 = vpop.permute.xlu0 %547
      %549 = vrot.lane.b32.xlu0 %v544, 90
      %v550 = vpop.permute.xlu0 %549
      %v551 = vrot.slane %v548, 4
      %v552 = vrot.slane %v550, 4
      %vm553 = vcmask 736256
      %v554 = vsel %vm553, %v551, %v548
      %v555 = vsel %vm345, %v551, %v552
      %v556 = vsel %vm553, %v555, %v550
      %v559 = vadd.f32 %v530, %v554
      %v560 = vadd.f32 %v531, %v556
      %v561 = vld [vmem:[%s3] sm:$0xf]
      %563 = vset.pattern.permute.xlu0 0
      %564 = vperm.xlu0 %563, %v561
      %v565 = vpop.permute.xlu0 %564
      %v569 = vlaneseq
      %v570 = vshrl.u32 %v569, 7
      %v571 = vsub.s32 0, %v570
      %v572 = vrot.slane %v559, %v571
      %v573 = vlaneseq
      %v574 = vshrl.u32 %v573, 7
      %v575 = vsub.s32 4, %v574
      %v576 = vrot.slane %v559, %v575
      %v577 = vlaneseq
      %v578 = vshrl.u32 %v577, 7
      %v579 = vsub.s32 0, %v578
      %v580 = vrot.slane %v560, %v579
      %v581 = vlaneseq
      %v582 = vshrl.u32 %v581, 7
      %v583 = vsub.s32 4, %v582
      %v584 = vrot.slane %v560, %v583
      %v589 = vlaneseq
      %v590 = vshrl.u32 %v589, 7
      %v591 = vsub.s32 0, %v590
      %v592 = vrot.slane %v572, %v591
      %v593 = vlaneseq
      %v594 = vshrl.u32 %v593, 7
      %v595 = vsub.s32 0, %v594
      %v596 = vrot.slane %v576, %v595
      %v597 = vlaneseq
      %v598 = vshrl.u32 %v597, 7
      %v599 = vsub.s32 0, %v598
      %v600 = vrot.slane %v580, %v599
      %v601 = vlaneseq
      %v602 = vshrl.u32 %v601, 7
      %v603 = vsub.s32 0, %v602
      %v604 = vrot.slane %v584, %v603
      %v605 = vmul.f32 %v565, %v592
      %v606 = vmul.f32 %v565, %v596
      %v607 = vmul.f32 %v565, %v600
      %v608 = vmul.f32 %v565, %v604
      %609 = vset.pattern.permute.xlu0 1
      %610 = vperm.xlu0 %609, %v561
      %v611 = vpop.permute.xlu0 %610
      %v613 = vlaneseq
      %v614 = vshrl.u32 %v613, 7
      %v615 = vsub.s32 1, %v614
      %v616 = vrot.slane %v559, %v615
      %v617 = vlaneseq
      %v618 = vshrl.u32 %v617, 7
      %v619 = vsub.s32 5, %v618
      %v620 = vrot.slane %v559, %v619
      %v621 = vlaneseq
      %v622 = vshrl.u32 %v621, 7
      %v623 = vsub.s32 1, %v622
      %v624 = vrot.slane %v560, %v623
      %v625 = vlaneseq
      %v626 = vshrl.u32 %v625, 7
      %v627 = vsub.s32 5, %v626
      %v628 = vrot.slane %v560, %v627
      %v633 = vlaneseq
      %v634 = vshrl.u32 %v633, 7
      %v635 = vsub.s32 1, %v634
      %v636 = vrot.slane %v616, %v635
      %v637 = vlaneseq
      %v638 = vshrl.u32 %v637, 7
      %v639 = vsub.s32 1, %v638
      %v640 = vrot.slane %v620, %v639
      %v641 = vlaneseq
      %v642 = vshrl.u32 %v641, 7
      %v643 = vsub.s32 1, %v642
      %v644 = vrot.slane %v624, %v643
      %v645 = vlaneseq
      %v646 = vshrl.u32 %v645, 7
      %v647 = vsub.s32 1, %v646
      %v648 = vrot.slane %v628, %v647
      %v649 = vmul.f32 %v611, %v636
      %v650 = vmul.f32 %v611, %v640
      %v651 = vmul.f32 %v611, %v644
      %v652 = vmul.f32 %v611, %v648
      %v653 = vadd.f32 %v605, %v649
      %v654 = vadd.f32 %v606, %v650
      %v655 = vadd.f32 %v607, %v651
      %v656 = vadd.f32 %v608, %v652
      %657 = vset.pattern.permute.xlu0 2
      %658 = vperm.xlu0 %657, %v561
      %v659 = vpop.permute.xlu0 %658
      %v661 = vlaneseq
      %v662 = vshrl.u32 %v661, 7
      %v663 = vsub.s32 2, %v662
      %v664 = vrot.slane %v559, %v663
      %v665 = vlaneseq
      %v666 = vshrl.u32 %v665, 7
      %v667 = vsub.s32 6, %v666
      %v668 = vrot.slane %v559, %v667
      %v669 = vlaneseq
      %v670 = vshrl.u32 %v669, 7
      %v671 = vsub.s32 2, %v670
      %v672 = vrot.slane %v560, %v671
      %v673 = vlaneseq
      %v674 = vshrl.u32 %v673, 7
      %v675 = vsub.s32 6, %v674
      %v676 = vrot.slane %v560, %v675
      %v681 = vlaneseq
      %v682 = vshrl.u32 %v681, 7
      %v683 = vsub.s32 2, %v682
      %v684 = vrot.slane %v664, %v683
      %v685 = vlaneseq
      %v686 = vshrl.u32 %v685, 7
      %v687 = vsub.s32 2, %v686
      %v688 = vrot.slane %v668, %v687
      %v689 = vlaneseq
      %v690 = vshrl.u32 %v689, 7
      %v691 = vsub.s32 2, %v690
      %v692 = vrot.slane %v672, %v691
      %v693 = vlaneseq
      %v694 = vshrl.u32 %v693, 7
      %v695 = vsub.s32 2, %v694
      %v696 = vrot.slane %v676, %v695
      %v697 = vmul.f32 %v659, %v684
      %v698 = vmul.f32 %v659, %v688
      %v699 = vmul.f32 %v659, %v692
      %v700 = vmul.f32 %v659, %v696
      %v701 = vadd.f32 %v653, %v697
      %v702 = vadd.f32 %v654, %v698
      %v703 = vadd.f32 %v655, %v699
      %v704 = vadd.f32 %v656, %v700
      %705 = vset.pattern.permute.xlu0 3
      %706 = vperm.xlu0 %705, %v561
      %v707 = vpop.permute.xlu0 %706
      %v709 = vlaneseq
      %v710 = vshrl.u32 %v709, 7
      %v711 = vsub.s32 3, %v710
      %v712 = vrot.slane %v559, %v711
      %v713 = vlaneseq
      %v714 = vshrl.u32 %v713, 7
      %v715 = vsub.s32 7, %v714
      %v716 = vrot.slane %v559, %v715
      %v717 = vlaneseq
      %v718 = vshrl.u32 %v717, 7
      %v719 = vsub.s32 3, %v718
      %v720 = vrot.slane %v560, %v719
      %v721 = vlaneseq
      %v722 = vshrl.u32 %v721, 7
      %v723 = vsub.s32 7, %v722
      %v724 = vrot.slane %v560, %v723
      %v729 = vlaneseq
      %v730 = vshrl.u32 %v729, 7
      %v731 = vsub.s32 3, %v730
      %v732 = vrot.slane %v712, %v731
      %v733 = vlaneseq
      %v734 = vshrl.u32 %v733, 7
      %v735 = vsub.s32 3, %v734
      %v736 = vrot.slane %v716, %v735
      %v737 = vlaneseq
      %v738 = vshrl.u32 %v737, 7
      %v739 = vsub.s32 3, %v738
      %v740 = vrot.slane %v720, %v739
      %v741 = vlaneseq
      %v742 = vshrl.u32 %v741, 7
      %v743 = vsub.s32 3, %v742
      %v744 = vrot.slane %v724, %v743
      %v745 = vmul.f32 %v707, %v732
      %v746 = vmul.f32 %v707, %v736
      %v747 = vmul.f32 %v707, %v740
      %v748 = vmul.f32 %v707, %v744
      %v749 = vadd.f32 %v701, %v745
      %v750 = vadd.f32 %v702, %v746
      %v751 = vadd.f32 %v703, %v747
      %v752 = vadd.f32 %v704, %v748
      %v753 = vld [vmem:[%s4] sm:$0xf]
      %755 = vset.pattern.permute.xlu0 0
      %756 = vperm.xlu0 %755, %v753
      %v757 = vpop.permute.xlu0 %756
      %v759 = vadd.f32 %v749, %v757
      %v760 = vadd.f32 %v750, %v757
      %v761 = vadd.f32 %v751, %v757
      %v762 = vadd.f32 %v752, %v757
      %v764 = vlaneseq
      %v765 = vshrl.u32 %v764, 7
      %v766 = vsub.s32 0, %v765
      %v767 = vrot.slane %v306, %v766
      %v768 = vlaneseq
      %v769 = vshrl.u32 %v768, 7
      %v770 = vsub.s32 1, %v769
      %v771 = vrot.slane %v306, %v770
      %v772 = vlaneseq
      %v773 = vshrl.u32 %v772, 7
      %v774 = vsub.s32 2, %v773
      %v775 = vrot.slane %v306, %v774
      %776 = vrot.lane.b32.xlu0 %v767, 109
      %v777 = vpop.permute.xlu0 %776
      %778 = vrot.lane.b32.xlu0 %v771, 109
      %v779 = vpop.permute.xlu0 %778
      %780 = vrot.lane.b32.xlu0 %v775, 109
      %v781 = vpop.permute.xlu0 %780
      %v782 = vsel %vm435, %v777, %v779
      %v783 = vsel %vm435, %v779, %v781
      %v788 = vmul.f32 %v759, %v777
      %v789 = vmul.f32 %v760, %v782
      %v790 = vmul.f32 %v761, %v783
      %v791 = vmul.f32 %v762, %v781
      %796 = vrot.lane.b32.xlu0 %v788, 19
      %v797 = vpop.permute.xlu0 %796
      %798 = vrot.lane.b32.xlu0 %v789, 19
      %v799 = vpop.permute.xlu0 %798
      %800 = vrot.lane.b32.xlu0 %v790, 19
      %v801 = vpop.permute.xlu0 %800
      %802 = vrot.lane.b32.xlu0 %v791, 19
      %v803 = vpop.permute.xlu0 %802
      %vm804 = vcmask 154624
      %v805 = vsel %vm804, %v797, %v799
      %v806 = vsel %vm804, %v799, %v801
      %v807 = vsel %vm804, %v801, %v803
      %v811 = vld [vmem:[%s5] sm:$0xf]
      %813 = vset.pattern.permute.xlu0 0
      %814 = vperm.xlu0 %813, %v811
      %v815 = vpop.permute.xlu0 %814
      %v817 = vmul.f32 %v815, 0.0
      %v818 = vmul.f32 %v805, %v815
      %v819 = vmul.f32 %v806, %v815
      %v820 = vmul.f32 %v807, %v815
      %821 = vset.pattern.permute.xlu0 1
      %822 = vperm.xlu0 %821, %v811
      %v823 = vpop.permute.xlu0 %822
      %v825 = vmul.f32 %v823, 0.0
      %v826 = vmul.f32 %v805, %v823
      %v827 = vmul.f32 %v806, %v823
      %v828 = vmul.f32 %v807, %v823
      %833 = vrot.lane.b32.xlu0 %v825, 127
      %v834 = vpop.permute.xlu0 %833
      %835 = vrot.lane.b32.xlu0 %v826, 127
      %v836 = vpop.permute.xlu0 %835
      %837 = vrot.lane.b32.xlu0 %v827, 127
      %v838 = vpop.permute.xlu0 %837
      %839 = vrot.lane.b32.xlu0 %v828, 127
      %v840 = vpop.permute.xlu0 %839
      %v841 = vsel %vm347, %v834, %v836
      %v842 = vsel %vm347, %v836, %v838
      %v843 = vsel %vm347, %v838, %v840
      %v848 = vadd.f32 %v817, %v841
      %v849 = vadd.f32 %v818, %v842
      %v850 = vadd.f32 %v819, %v843
      %v851 = vadd.f32 %v820, %v840
      %852 = vset.pattern.permute.xlu0 2
      %853 = vperm.xlu0 %852, %v811
      %v854 = vpop.permute.xlu0 %853
      %v856 = vmul.f32 %v854, 0.0
      %v857 = vmul.f32 %v805, %v854
      %v858 = vmul.f32 %v806, %v854
      %v859 = vmul.f32 %v807, %v854
      %864 = vrot.lane.b32.xlu0 %v856, 126
      %v865 = vpop.permute.xlu0 %864
      %866 = vrot.lane.b32.xlu0 %v857, 126
      %v867 = vpop.permute.xlu0 %866
      %868 = vrot.lane.b32.xlu0 %v858, 126
      %v869 = vpop.permute.xlu0 %868
      %870 = vrot.lane.b32.xlu0 %v859, 126
      %v871 = vpop.permute.xlu0 %870
      %v872 = vsel %vm376, %v865, %v867
      %v873 = vsel %vm376, %v867, %v869
      %v874 = vsel %vm376, %v869, %v871
      %v879 = vadd.f32 %v848, %v872
      %v880 = vadd.f32 %v849, %v873
      %v881 = vadd.f32 %v850, %v874
      %v882 = vadd.f32 %v851, %v871
      %883 = vset.pattern.permute.xlu0 3
      %884 = vperm.xlu0 %883, %v811
      %v885 = vpop.permute.xlu0 %884
      %v887 = vmul.f32 %v885, 0.0
      %v888 = vmul.f32 %v805, %v885
      %v889 = vmul.f32 %v806, %v885
      %v890 = vmul.f32 %v807, %v885
      %895 = vrot.lane.b32.xlu0 %v887, 110
      %v896 = vpop.permute.xlu0 %895
      %897 = vrot.lane.b32.xlu0 %v888, 110
      %v898 = vpop.permute.xlu0 %897
      %899 = vrot.lane.b32.xlu0 %v889, 110
      %v900 = vpop.permute.xlu0 %899
      %901 = vrot.lane.b32.xlu0 %v890, 110
      %v902 = vpop.permute.xlu0 %901
      %v903 = vsel %vm405, %v896, %v898
      %v904 = vsel %vm405, %v898, %v900
      %v905 = vsel %vm405, %v900, %v902
      %v910 = vadd.f32 %v879, %v903
      %v911 = vadd.f32 %v880, %v904
      %v912 = vadd.f32 %v881, %v905
      %v913 = vadd.f32 %v882, %v902
      %914 = vset.pattern.permute.xlu0 4
      %915 = vperm.xlu0 %914, %v811
      %v916 = vpop.permute.xlu0 %915
      %v918 = vmul.f32 %v805, %v916
      %v919 = vmul.f32 %v806, %v916
      %v920 = vmul.f32 %v807, %v916
      %924 = vrot.lane.b32.xlu0 %v918, 109
      %v925 = vpop.permute.xlu0 %924
      %926 = vrot.lane.b32.xlu0 %v919, 109
      %v927 = vpop.permute.xlu0 %926
      %928 = vrot.lane.b32.xlu0 %v920, 109
      %v929 = vpop.permute.xlu0 %928
      %v930 = vsel %vm435, %v925, %v927
      %v931 = vsel %vm435, %v927, %v929
      %v936 = vadd.f32 %v910, %v925
      %v937 = vadd.f32 %v911, %v930
      %v938 = vadd.f32 %v912, %v931
      %v939 = vadd.f32 %v913, %v929
      %940 = vset.pattern.permute.xlu0 5
      %941 = vperm.xlu0 %940, %v811
      %v942 = vpop.permute.xlu0 %941
      %v944 = vmul.f32 %v805, %v942
      %v945 = vmul.f32 %v806, %v942
      %v946 = vmul.f32 %v807, %v942
      %v947 = vmul.f32 %v942, 0.0
      %952 = vrot.lane.b32.xlu0 %v944, 108
      %v953 = vpop.permute.xlu0 %952
      %954 = vrot.lane.b32.xlu0 %v945, 108
      %v955 = vpop.permute.xlu0 %954
      %956 = vrot.lane.b32.xlu0 %v946, 108
      %v957 = vpop.permute.xlu0 %956
      %958 = vrot.lane.b32.xlu0 %v947, 108
      %v959 = vpop.permute.xlu0 %958
      %v960 = vsel %vm466, %v953, %v955
      %v961 = vsel %vm466, %v955, %v957
      %v962 = vsel %vm466, %v957, %v959
      %v967 = vadd.f32 %v936, %v953
      %v968 = vadd.f32 %v937, %v960
      %v969 = vadd.f32 %v938, %v961
      %v970 = vadd.f32 %v939, %v962
      %971 = vset.pattern.permute.xlu0 6
      %972 = vperm.xlu0 %971, %v811
      %v973 = vpop.permute.xlu0 %972
      %v975 = vmul.f32 %v805, %v973
      %v976 = vmul.f32 %v806, %v973
      %v977 = vmul.f32 %v807, %v973
      %v978 = vmul.f32 %v973, 0.0
      %983 = vrot.lane.b32.xlu0 %v975, 92
      %v984 = vpop.permute.xlu0 %983
      %985 = vrot.lane.b32.xlu0 %v976, 92
      %v986 = vpop.permute.xlu0 %985
      %987 = vrot.lane.b32.xlu0 %v977, 92
      %v988 = vpop.permute.xlu0 %987
      %989 = vrot.lane.b32.xlu0 %v978, 92
      %v990 = vpop.permute.xlu0 %989
      %v991 = vsel %vm495, %v984, %v986
      %v992 = vsel %vm495, %v986, %v988
      %v993 = vsel %vm495, %v988, %v990
      %v998 = vadd.f32 %v967, %v984
      %v999 = vadd.f32 %v968, %v991
      %v1000 = vadd.f32 %v969, %v992
      %v1001 = vadd.f32 %v970, %v993
      %1002 = vset.pattern.permute.xlu0 7
      %1003 = vperm.xlu0 %1002, %v811
      %v1004 = vpop.permute.xlu0 %1003
      %v1006 = vmul.f32 %v805, %v1004
      %v1007 = vmul.f32 %v806, %v1004
      %v1008 = vmul.f32 %v807, %v1004
      %v1009 = vmul.f32 %v1004, 0.0
      %1014 = vrot.lane.b32.xlu0 %v1006, 91
      %v1015 = vpop.permute.xlu0 %1014
      %1016 = vrot.lane.b32.xlu0 %v1007, 91
      %v1017 = vpop.permute.xlu0 %1016
      %1018 = vrot.lane.b32.xlu0 %v1008, 91
      %v1019 = vpop.permute.xlu0 %1018
      %1020 = vrot.lane.b32.xlu0 %v1009, 91
      %v1021 = vpop.permute.xlu0 %1020
      %v1022 = vsel %vm524, %v1015, %v1017
      %v1023 = vsel %vm524, %v1017, %v1019
      %v1024 = vsel %vm524, %v1019, %v1021
      %v1029 = vadd.f32 %v998, %v1015
      %v1030 = vadd.f32 %v999, %v1022
      %v1031 = vadd.f32 %v1000, %v1023
      %v1032 = vadd.f32 %v1001, %v1024
      %1033 = vset.pattern.permute.xlu0 8
      %1034 = vperm.xlu0 %1033, %v811
      %v1035 = vpop.permute.xlu0 %1034
      %v1037 = vmul.f32 %v805, %v1035
      %v1038 = vmul.f32 %v806, %v1035
      %v1039 = vmul.f32 %v807, %v1035
      %v1040 = vmul.f32 %v1035, 0.0
      %1045 = vrot.lane.b32.xlu0 %v1037, 90
      %v1046 = vpop.permute.xlu0 %1045
      %1047 = vrot.lane.b32.xlu0 %v1038, 90
      %v1048 = vpop.permute.xlu0 %1047
      %1049 = vrot.lane.b32.xlu0 %v1039, 90
      %v1050 = vpop.permute.xlu0 %1049
      %1051 = vrot.lane.b32.xlu0 %v1040, 90
      %v1052 = vpop.permute.xlu0 %1051
      %v1053 = vsel %vm553, %v1046, %v1048
      %v1054 = vsel %vm553, %v1048, %v1050
      %v1055 = vsel %vm553, %v1050, %v1052
      %v1060 = vadd.f32 %v1029, %v1046
      %v1061 = vadd.f32 %v1030, %v1053
      %v1062 = vadd.f32 %v1031, %v1054
      %v1063 = vadd.f32 %v1032, %v1055
      %v1064 = vld [vmem:[%s6] sm:$0xf]
      %1066 = vset.pattern.permute.xlu0 0
      %1067 = vperm.xlu0 %1066, %v1064
      %v1068 = vpop.permute.xlu0 %1067
      %v1070 = vlaneseq
      %v1071 = vshrl.u32 %v1070, 7
      %v1072 = vsub.s32 0, %v1071
      %v1073 = vrot.slane %v1060, %v1072
      %v1074 = vlaneseq
      %v1075 = vshrl.u32 %v1074, 7
      %v1076 = vsub.s32 0, %v1075
      %v1077 = vrot.slane %v1061, %v1076
      %v1078 = vlaneseq
      %v1079 = vshrl.u32 %v1078, 7
      %v1080 = vsub.s32 0, %v1079
      %v1081 = vrot.slane %v1062, %v1080
      %v1082 = vlaneseq
      %v1083 = vshrl.u32 %v1082, 7
      %v1084 = vsub.s32 0, %v1083
      %v1085 = vrot.slane %v1063, %v1084
      %v1086 = vmul.f32 %v1068, %v1073
      %v1087 = vmul.f32 %v1068, %v1077
      %v1088 = vmul.f32 %v1068, %v1081
      %v1089 = vmul.f32 %v1068, %v1085
      %1090 = vset.pattern.permute.xlu0 1
      %1091 = vperm.xlu0 %1090, %v1064
      %v1092 = vpop.permute.xlu0 %1091
      %v1094 = vlaneseq
      %v1095 = vshrl.u32 %v1094, 7
      %v1096 = vsub.s32 1, %v1095
      %v1097 = vrot.slane %v1060, %v1096
      %v1098 = vlaneseq
      %v1099 = vshrl.u32 %v1098, 7
      %v1100 = vsub.s32 1, %v1099
      %v1101 = vrot.slane %v1061, %v1100
      %v1102 = vlaneseq
      %v1103 = vshrl.u32 %v1102, 7
      %v1104 = vsub.s32 1, %v1103
      %v1105 = vrot.slane %v1062, %v1104
      %v1106 = vlaneseq
      %v1107 = vshrl.u32 %v1106, 7
      %v1108 = vsub.s32 1, %v1107
      %v1109 = vrot.slane %v1063, %v1108
      %v1110 = vmul.f32 %v1092, %v1097
      %v1111 = vmul.f32 %v1092, %v1101
      %v1112 = vmul.f32 %v1092, %v1105
      %v1113 = vmul.f32 %v1092, %v1109
      %v1114 = vadd.f32 %v1086, %v1110
      %v1115 = vadd.f32 %v1087, %v1111
      %v1116 = vadd.f32 %v1088, %v1112
      %v1117 = vadd.f32 %v1089, %v1113
      %1118 = vset.pattern.permute.xlu0 2
      %1119 = vperm.xlu0 %1118, %v1064
      %v1120 = vpop.permute.xlu0 %1119
      %v1122 = vlaneseq
      %v1123 = vshrl.u32 %v1122, 7
      %v1124 = vsub.s32 2, %v1123
      %v1125 = vrot.slane %v1060, %v1124
      %v1126 = vlaneseq
      %v1127 = vshrl.u32 %v1126, 7
      %v1128 = vsub.s32 2, %v1127
      %v1129 = vrot.slane %v1061, %v1128
      %v1130 = vlaneseq
      %v1131 = vshrl.u32 %v1130, 7
      %v1132 = vsub.s32 2, %v1131
      %v1133 = vrot.slane %v1062, %v1132
      %v1134 = vlaneseq
      %v1135 = vshrl.u32 %v1134, 7
      %v1136 = vsub.s32 2, %v1135
      %v1137 = vrot.slane %v1063, %v1136
      %v1138 = vmul.f32 %v1120, %v1125
      %v1139 = vmul.f32 %v1120, %v1129
      %v1140 = vmul.f32 %v1120, %v1133
      %v1141 = vmul.f32 %v1120, %v1137
      %v1142 = vadd.f32 %v1114, %v1138
      %v1143 = vadd.f32 %v1115, %v1139
      %v1144 = vadd.f32 %v1116, %v1140
      %v1145 = vadd.f32 %v1117, %v1141
      %1146 = vset.pattern.permute.xlu0 3
      %1147 = vperm.xlu0 %1146, %v1064
      %v1148 = vpop.permute.xlu0 %1147
      %v1150 = vlaneseq
      %v1151 = vshrl.u32 %v1150, 7
      %v1152 = vsub.s32 3, %v1151
      %v1153 = vrot.slane %v1060, %v1152
      %v1154 = vlaneseq
      %v1155 = vshrl.u32 %v1154, 7
      %v1156 = vsub.s32 3, %v1155
      %v1157 = vrot.slane %v1061, %v1156
      %v1158 = vlaneseq
      %v1159 = vshrl.u32 %v1158, 7
      %v1160 = vsub.s32 3, %v1159
      %v1161 = vrot.slane %v1062, %v1160
      %v1162 = vlaneseq
      %v1163 = vshrl.u32 %v1162, 7
      %v1164 = vsub.s32 3, %v1163
      %v1165 = vrot.slane %v1063, %v1164
      %v1166 = vmul.f32 %v1148, %v1153
      %v1167 = vmul.f32 %v1148, %v1157
      %v1168 = vmul.f32 %v1148, %v1161
      %v1169 = vmul.f32 %v1148, %v1165
      %v1170 = vadd.f32 %v1142, %v1166
      %v1171 = vadd.f32 %v1143, %v1167
      %v1172 = vadd.f32 %v1144, %v1168
      %v1173 = vadd.f32 %v1145, %v1169
      %v1174 = vld [vmem:[%s7] sm:$0xf]
      %1176 = vset.pattern.permute.xlu0 0
      %1177 = vperm.xlu0 %1176, %v1174
      %v1178 = vpop.permute.xlu0 %1177
      %v1180 = vadd.f32 %v1170, %v1178
      %v1181 = vadd.f32 %v1171, %v1178
      %v1182 = vadd.f32 %v1172, %v1178
      %v1183 = vadd.f32 %v1173, %v1178
      %v1186 = vcombine.high %v412, %v412
      %1187 = vrot.lane.b32.xlu0 %v412, 109
      %v1188 = vpop.permute.xlu0 %1187
      %1189 = vrot.lane.b32.xlu0 %v1186, 109
      %v1190 = vpop.permute.xlu0 %1189
      %1191 = vrot.lane.b32.xlu0 %v413, 109
      %v1192 = vpop.permute.xlu0 %1191
      %v1193 = vsel %vm435, %v1188, %v1190
      %v1194 = vsel %vm435, %v1190, %v1192
      %v1199 = vadd.f32 %v1180, %v1188
      %v1200 = vadd.f32 %v1181, %v1193
      %v1201 = vadd.f32 %v1182, %v1194
      %v1202 = vadd.f32 %v1183, %v1192
      %v1203 = vmax.f32 %v1199, 0.0
      %v1204 = vmax.f32 %v1200, 0.0
      %v1205 = vmax.f32 %v1201, 0.0
      %v1206 = vmax.f32 %v1202, 0.0
      %v1211 = vcombine.low %v1203, %v1204
      %v1212 = vcombine.low %v1205, %v1206
      %1213 = vrot.lane.b32.xlu0 %v1211, 19
      %v1214 = vpop.permute.xlu0 %1213
      %1215 = vrot.lane.b32.xlu0 %v1212, 19
      %v1216 = vpop.permute.xlu0 %1215
      %v1217 = vrot.slane %v1214, 4
      %v1218 = vrot.slane %v1216, 4
      %v1219 = vsel %vm345, %v1217, %v1218
      %v1220 = vsel %vm804, %v1214, %v1219
      %v1221 = vsel %vm804, %v1216, %v1218
      %1224 = vst [vmem:[%s305] sm:$0xff] %v1220
      %1225 = vst [vmem:[%s305 + $0x8] sm:$0xf] %v1221
      %p1226 = scmp.lt.s32.totalorder %s19, 1
      %s1227 = scalar_select %p1226, %s19, 1
      %s1228 = smul.addr %s1227, 3
      %s1229 = smul.addr %s1228, 4
      %s1230 = scalar_lea.vmem %s8, %s1229
      // Predicated region
      $region53: #{block_dual_forward.1} parent=51 // pred_check
        %p1231 = pneg %p210
      $region54: #{block_dual_forward.1} parent=51 // pred_check_branch
        %1233 = sbr.rel (%p1231) target = $region56
      $region55: #{block_dual_forward.1} parent=51 // pred_region
        _
      $region56: #{block_dual_forward.1} parent=51 // pred_fallthru
        _
    $region52: #{block_dual_forward.1} parent=5 // pred_fallthru
      _
    %p1234 = scmp.le.s32.totalorder 2, %s14
    // Predicated region
    $region57: #{block_dual_forward.1} parent=5 // pred_check
      %p1235 = pneg %p1234
    $region58: #{block_dual_forward.1} parent=5 // pred_check_branch
      %1237 = sbr.rel (%p1235) target = $region60
    $region59: #{block_dual_forward.1} parent=5 // pred_region
      %s1238 = ssub.s32 %s14, 2
      // Predicated region
      $region61: #{block_dual_forward.1} parent=59 // pred_check
        %p1239 = pneg %p216
      $region62: #{block_dual_forward.1} parent=59 // pred_check_branch
        %1241 = sbr.rel (%p1239) target = $region64
      $region63: #{block_dual_forward.1} parent=59 // pred_region
        %p1242 = scmp.lt.s32.totalorder %s20, 1
        %s1243 = scalar_select %p1242, %s20, 1
        %s1244 = smul.addr %s1243, 3
        %s1245 = smul.addr %s1244, 4
        %s1246 = scalar_lea.vmem %s8, %s1245
      $region64: #{block_dual_forward.1} parent=59 // pred_fallthru
        _
    $region60: #{block_dual_forward.1} parent=5 // pred_fallthru
      _
  $region6: #{block_dual_forward.1} parent=0 // loop_footer
    %s18 = sadd.s32 1, %s14
  $region7: #{block_dual_forward.1} parent=0 // loop_footer_branch
    %13 = sbr.rel target = $region3
  $region8: #{block_dual_forward.1} parent=0 // loop_exit
    _

</llo_original>
